<compile_context>
chip_gen: v7x
topology: tpu7x:2x2x1
jax: 0.10.0
libtpu: 0.0.40
codegen_flags: <defaults>
</compile_context>

<pallas_src>
import functools

import jax
import jax.numpy as jnp
from jax.experimental import pallas as pl
from jax.experimental.pallas import tpu as pltpu


def _round_up(x, m):
    return ((x + m - 1) // m) * m


def _make_kernel(n_hot, eps):
    """n_hot = hot columns per packed row (2 * pack: item + position id for
    each of the `pack` tokens sharing one 128-lane output row)."""

    def kernel(ids_ref, w_ref, seg_ref, gamma_ref, beta_ref, out_ref):
        # ids_ref   : VMEM (rows, n_hot) int32  -- pre-offset table row ids
        # w_ref     : VMEM (K, lanes) resident  -- lane-replicated [item|pos] table
        # seg_ref   : VMEM (lanes, lanes) resident -- blockdiag(ones(H,H))/H
        # gamma_ref : VMEM (1, lanes), beta_ref : VMEM (1, lanes)
        # out_ref   : VMEM (rows, lanes) lane-packed output tile
        ids = ids_ref[...]
        rows = ids.shape[0]
        k = w_ref.shape[0]

        # Multi-hot gather matrix: row r has a 1 in every column listed in
        # ids[r, :] (all id ranges are disjoint by construction).
        col = jax.lax.broadcasted_iota(jnp.int32, (rows, k), 1)
        oh = (col == ids[:, 0:1]).astype(jnp.float32)
        for j in range(1, n_hot):
            oh = oh + (col == ids[:, j:j + 1]).astype(jnp.float32)

        # One MXU matmul gathers item+position embeddings for `pack` tokens
        # per row, already lane-packed: x[r, j*H:(j+1)*H] = emb(token r*pack+j).
        x = jnp.dot(oh, w_ref[...], preferred_element_type=jnp.float32)

        # TF-style LayerNorm per token: segmented (per 32-lane group) mean and
        # variance via the blockdiag averaging matrix on the MXU; elementwise
        # part on the VPU, rsqrt on the EUP.
        u = jnp.dot(x, seg_ref[...], preferred_element_type=jnp.float32)
        d = x - u
        s = jnp.dot(d * d, seg_ref[...], preferred_element_type=jnp.float32)
        y = d * jax.lax.rsqrt(s + jnp.float32(eps))
        out_ref[...] = (gamma_ref[...] * y + beta_ref[...]).astype(out_ref.dtype)

    return kernel


@functools.partial(jax.jit, static_argnames=("eps", "tile_tok"))
def embeddings_forward(input_ids, item_table, pos_table, gamma, beta,
                       eps=1e-12, tile_tok=None):
    """input_ids: (B, S) int32.  Returns (B, S, H) float32."""
    B, S = input_ids.shape
    V, H = item_table.shape
    P = pos_table.shape[0]
    VP = V + P
    n_tok = B * S
    f32 = jnp.float32

    # Lane packing: `pack` tokens share one 128-lane output row when H | 128.
    pack = 128 // H if (H <= 128 and 128 % H == 0) else 1
    lanes = pack * H

    # Token tile: packed rows must land on whole 8-sublane groups.  Up to 1024
    # tokens per step; larger problems naturally get grid >= 2 so the
    # "parallel" axis can shard across v7x's two TensorCores.
    align = 8 * pack
    if tile_tok is None:
        tile_tok = min(1024, _round_up(n_tok, align))
    tile_tok = max(align, _round_up(tile_tok, align))
    n_pad = _round_up(n_tok, tile_tok)
    grid = n_pad // tile_tok
    rows_per_tile = tile_tok // pack
    n_rows = n_pad // pack

    # --- tiny host-side precomputation (all shapes static) -----------------
    # Stacked [item | position] table replicated onto the diagonal of a
    # (pack*VP, pack*H) block matrix -> one matmul emits lane-packed rows.
    table_cat = jnp.concatenate([item_table.astype(f32), pos_table.astype(f32)], axis=0)
    wide = jnp.kron(jnp.eye(pack, dtype=f32), table_cat)                    # (pack*VP, lanes)
    # Segmented averaging matrix: blockdiag of ones(H,H)/H.
    seg = jnp.kron(jnp.eye(pack, dtype=f32), jnp.ones((H, H), f32) / H)     # (lanes, lanes)
    gamma_p = jnp.tile(gamma.astype(f32).reshape(1, H), (1, pack))          # (1, lanes)
    beta_p = jnp.tile(beta.astype(f32).reshape(1, H), (1, pack))            # (1, lanes)

    # Per token: [item_id, V + pos_id]; each of the `pack` slots in a packed
    # row is offset by slot*VP so all hot columns are disjoint.
    ids_flat = input_ids.reshape(n_tok).astype(jnp.int32)
    pos_flat = jnp.arange(n_tok, dtype=jnp.int32) % S
    if n_pad != n_tok:
        padn = n_pad - n_tok
        ids_flat = jnp.pad(ids_flat, (0, padn))   # padded tokens -> item 0 / pos 0,
        pos_flat = jnp.pad(pos_flat, (0, padn))   # computed then sliced off
    two = jnp.stack([ids_flat, pos_flat + V], axis=-1)                      # (n_pad, 2)
    two = two.reshape(n_rows, pack, 2)
    slot_off = (jnp.arange(pack, dtype=jnp.int32) * VP).reshape(1, pack, 1)
    ids_packed = (two + slot_off).reshape(n_rows, 2 * pack)                 # (n_rows, 2*pack)

    # --- VMEM budget: resident tables + double-buffered blocks + temps -----
    resident = (wide.size + seg.size + gamma_p.size + beta_p.size) * 4
    per_step = (2 * rows_per_tile * 2 * pack * 4        # ids blocks (2 buffers)
                + 2 * rows_per_tile * lanes * 4         # out blocks (2 buffers)
                + rows_per_tile * pack * VP * 4         # one-hot temp
                + 4 * rows_per_tile * lanes * 4)        # x/u/d/s temps
    vmem_limit = int(min(56 * 1024 * 1024,
                         max(16 * 1024 * 1024, 2 * (resident + per_step))))

    kernel = _make_kernel(2 * pack, eps)

    grid_spec = pltpu.PrefetchScalarGridSpec(
        num_scalar_prefetch=0,
        grid=(grid,),
        in_specs=[
            pl.BlockSpec((rows_per_tile, 2 * pack), lambda i: (i, 0)),      # ids (blocked)
            pl.BlockSpec(memory_space=pltpu.MemorySpace.VMEM),              # wide table (resident)
            pl.BlockSpec(memory_space=pltpu.MemorySpace.VMEM),              # seg matrix (resident)
            pl.BlockSpec(memory_space=pltpu.MemorySpace.VMEM),              # gamma (1, lanes)
            pl.BlockSpec(memory_space=pltpu.MemorySpace.VMEM),              # beta  (1, lanes)
        ],
        out_specs=pl.BlockSpec((rows_per_tile, lanes), lambda i: (i, 0)),
    )

    out_packed = pl.pallas_call(
        kernel,
        out_shape=jax.ShapeDtypeStruct((n_rows, lanes), f32),
        grid_spec=grid_spec,
        compiler_params=pltpu.CompilerParams(
            dimension_semantics=("parallel",),       # token tiles are independent
            vmem_limit_bytes=vmem_limit),
    )(ids_packed, wide, seg, gamma_p, beta_p)

    # (n_rows, pack*H) -> (n_pad, H) is a free row-major reshape; drop padding.
    return out_packed.reshape(n_pad, H)[:n_tok].reshape(B, S, H)


def embeddings_reference(input_ids, item_table, pos_table, gamma, beta, eps=1e-12):
    B, S = input_ids.shape
    items = jnp.take(item_table, input_ids, axis=0)
    pos = jnp.take(pos_table, jnp.arange(S), axis=0)[None, :, :]
    x = items + pos
    u = jnp.mean(x, axis=-1, keepdims=True)
    s = jnp.mean((x - u) ** 2, axis=-1, keepdims=True)
    x = (x - u) / jnp.sqrt(s + eps)
    return gamma * x + beta


if __name__ == "__main__":
    # Module hyper-params (small, consistent with Embeddings.__init__)
    item_size = 64
    hidden_size = 32
    max_seq_length = 16
    hidden_dropout_prob = 0.1  # unused in eval mode

    batch = 2
    seq_len = 8

    key = jax.random.PRNGKey(0)
    k_item, k_pos, k_g, k_b, k_ids = jax.random.split(key, 5)

    item_table = jax.random.normal(k_item, (item_size, hidden_size), dtype=jnp.float32)
    pos_table = jax.random.normal(k_pos, (max_seq_length, hidden_size), dtype=jnp.float32)
    # Non-trivial affine params so the check exercises the gamma/beta lane mapping.
    gamma = 1.0 + 0.1 * jax.random.normal(k_g, (hidden_size,), dtype=jnp.float32)
    beta = 0.1 * jax.random.normal(k_b, (hidden_size,), dtype=jnp.float32)

    input_ids = jax.random.randint(k_ids, (batch, seq_len), 0, item_size, dtype=jnp.int32)

    out = embeddings_forward(input_ids, item_table, pos_table, gamma, beta)
    out = jax.block_until_ready(out)

    ref = embeddings_reference(input_ids, item_table, pos_table, gamma, beta)
    assert out.shape == (batch, seq_len, hidden_size)
    # Tolerance leaves headroom for MXU f32-pass rounding in the gather /
    # segmented-reduction matmuls; structural errors (wrong gather, wrong
    # segmentation, wrong lane packing, wrong affine) would be O(0.1..1).
    assert jnp.allclose(out, ref, atol=2e-2, rtol=2e-2), "mismatch vs reference"

    print("KERNEL_OK")
</pallas_src>

<mosaic_0001>
module attributes {stable_mosaic.version = 11 : i64} {
  func.func @kernel(%arg0: i32, %arg1: memref<8x8xi32, #tpu.memory_space<vmem>>, %arg2: memref<320x128xf32, #tpu.memory_space<vmem>>, %arg3: memref<128x128xf32, #tpu.memory_space<vmem>>, %arg4: memref<1x128xf32, #tpu.memory_space<vmem>>, %arg5: memref<1x128xf32, #tpu.memory_space<vmem>>, %arg6: memref<8x128xf32, #tpu.memory_space<vmem>>) attributes {dimension_semantics = [#tpu.dimension_semantics<parallel>], iteration_bounds = array<i64: 1>, scalar_prefetch = 0 : i64, scratch_operands = 0 : i64, tpu.core_type = #tpu.core_type<tc>, window_params = [{transform_indices = @transform_0, window_bounds = array<i64: 8, 8>}, {pipeline_mode = #tpu.pipeline_mode<synchronous>, transform_indices = @transform_1, window_bounds = array<i64: 320, 128>}, {pipeline_mode = #tpu.pipeline_mode<synchronous>, transform_indices = @transform_2, window_bounds = array<i64: 128, 128>}, {pipeline_mode = #tpu.pipeline_mode<synchronous>, transform_indices = @transform_3, window_bounds = array<i64: 1, 128>}, {pipeline_mode = #tpu.pipeline_mode<synchronous>, transform_indices = @transform_4, window_bounds = array<i64: 1, 128>}, {transform_indices = @transform_5, window_bounds = array<i64: 8, 128>}]} {
    %c0 = arith.constant 0 : index
    %c0_0 = arith.constant 0 : index
    %0 = vector.load %arg1[%c0, %c0_0] : memref<8x8xi32, #tpu.memory_space<vmem>>, vector<8x8xi32>
    %1 = tpu.iota {dimensions = array<i32: 1>} : vector<8x320xi32>
    %2 = vector.extract_strided_slice %0 {offsets = [0, 0], sizes = [8, 1], strides = [1, 1]} : vector<8x8xi32> to vector<8x1xi32>
    %3 = vector.broadcast %2 : vector<8x1xi32> to vector<8x320xi32>
    %4 = arith.cmpi eq, %1, %3 : vector<8x320xi32>
    %5 = arith.extui %4 : vector<8x320xi1> to vector<8x320xi32>
    %6 = arith.sitofp %5 : vector<8x320xi32> to vector<8x320xf32>
    %7 = vector.extract_strided_slice %0 {offsets = [0, 1], sizes = [8, 1], strides = [1, 1]} : vector<8x8xi32> to vector<8x1xi32>
    %8 = vector.broadcast %7 : vector<8x1xi32> to vector<8x320xi32>
    %9 = arith.cmpi eq, %1, %8 : vector<8x320xi32>
    %10 = arith.extui %9 : vector<8x320xi1> to vector<8x320xi32>
    %11 = arith.sitofp %10 : vector<8x320xi32> to vector<8x320xf32>
    %12 = arith.addf %6, %11 : vector<8x320xf32>
    %13 = vector.extract_strided_slice %0 {offsets = [0, 2], sizes = [8, 1], strides = [1, 1]} : vector<8x8xi32> to vector<8x1xi32>
    %14 = vector.broadcast %13 : vector<8x1xi32> to vector<8x320xi32>
    %15 = arith.cmpi eq, %1, %14 : vector<8x320xi32>
    %16 = arith.extui %15 : vector<8x320xi1> to vector<8x320xi32>
    %17 = arith.sitofp %16 : vector<8x320xi32> to vector<8x320xf32>
    %18 = arith.addf %12, %17 : vector<8x320xf32>
    %19 = vector.extract_strided_slice %0 {offsets = [0, 3], sizes = [8, 1], strides = [1, 1]} : vector<8x8xi32> to vector<8x1xi32>
    %20 = vector.broadcast %19 : vector<8x1xi32> to vector<8x320xi32>
    %21 = arith.cmpi eq, %1, %20 : vector<8x320xi32>
    %22 = arith.extui %21 : vector<8x320xi1> to vector<8x320xi32>
    %23 = arith.sitofp %22 : vector<8x320xi32> to vector<8x320xf32>
    %24 = arith.addf %18, %23 : vector<8x320xf32>
    %25 = vector.extract_strided_slice %0 {offsets = [0, 4], sizes = [8, 1], strides = [1, 1]} : vector<8x8xi32> to vector<8x1xi32>
    %26 = vector.broadcast %25 : vector<8x1xi32> to vector<8x320xi32>
    %27 = arith.cmpi eq, %1, %26 : vector<8x320xi32>
    %28 = arith.extui %27 : vector<8x320xi1> to vector<8x320xi32>
    %29 = arith.sitofp %28 : vector<8x320xi32> to vector<8x320xf32>
    %30 = arith.addf %24, %29 : vector<8x320xf32>
    %31 = vector.extract_strided_slice %0 {offsets = [0, 5], sizes = [8, 1], strides = [1, 1]} : vector<8x8xi32> to vector<8x1xi32>
    %32 = vector.broadcast %31 : vector<8x1xi32> to vector<8x320xi32>
    %33 = arith.cmpi eq, %1, %32 : vector<8x320xi32>
    %34 = arith.extui %33 : vector<8x320xi1> to vector<8x320xi32>
    %35 = arith.sitofp %34 : vector<8x320xi32> to vector<8x320xf32>
    %36 = arith.addf %30, %35 : vector<8x320xf32>
    %37 = vector.extract_strided_slice %0 {offsets = [0, 6], sizes = [8, 1], strides = [1, 1]} : vector<8x8xi32> to vector<8x1xi32>
    %38 = vector.broadcast %37 : vector<8x1xi32> to vector<8x320xi32>
    %39 = arith.cmpi eq, %1, %38 : vector<8x320xi32>
    %40 = arith.extui %39 : vector<8x320xi1> to vector<8x320xi32>
    %41 = arith.sitofp %40 : vector<8x320xi32> to vector<8x320xf32>
    %42 = arith.addf %36, %41 : vector<8x320xf32>
    %43 = vector.extract_strided_slice %0 {offsets = [0, 7], sizes = [8, 1], strides = [1, 1]} : vector<8x8xi32> to vector<8x1xi32>
    %44 = vector.broadcast %43 : vector<8x1xi32> to vector<8x320xi32>
    %45 = arith.cmpi eq, %1, %44 : vector<8x320xi32>
    %46 = arith.extui %45 : vector<8x320xi1> to vector<8x320xi32>
    %47 = arith.sitofp %46 : vector<8x320xi32> to vector<8x320xf32>
    %48 = arith.addf %42, %47 : vector<8x320xf32>
    %c0_1 = arith.constant 0 : index
    %c0_2 = arith.constant 0 : index
    %49 = vector.load %arg2[%c0_1, %c0_2] : memref<320x128xf32, #tpu.memory_space<vmem>>, vector<320x128xf32>
    %cst = arith.constant dense<0.000000e+00> : vector<8x128xf32>
    %50 = tpu.matmul %48, %49, %cst {dimension_numbers = #tpu.dot_dimension_numbers<[1], [0], [0], [1], [0, 0, 1, 1], [], []>} : vector<8x320xf32>, vector<320x128xf32>, vector<8x128xf32> -> vector<8x128xf32>
    %c0_3 = arith.constant 0 : index
    %c0_4 = arith.constant 0 : index
    %51 = vector.load %arg3[%c0_3, %c0_4] : memref<128x128xf32, #tpu.memory_space<vmem>>, vector<128x128xf32>
    %cst_5 = arith.constant dense<0.000000e+00> : vector<8x128xf32>
    %52 = tpu.matmul %50, %51, %cst_5 {dimension_numbers = #tpu.dot_dimension_numbers<[1], [0], [0], [1], [0, 0, 1, 1], [], []>} : vector<8x128xf32>, vector<128x128xf32>, vector<8x128xf32> -> vector<8x128xf32>
    %53 = arith.subf %50, %52 : vector<8x128xf32>
    %54 = arith.mulf %53, %53 : vector<8x128xf32>
    %c0_6 = arith.constant 0 : index
    %c0_7 = arith.constant 0 : index
    %55 = vector.load %arg3[%c0_6, %c0_7] : memref<128x128xf32, #tpu.memory_space<vmem>>, vector<128x128xf32>
    %cst_8 = arith.constant dense<0.000000e+00> : vector<8x128xf32>
    %56 = tpu.matmul %54, %55, %cst_8 {dimension_numbers = #tpu.dot_dimension_numbers<[1], [0], [0], [1], [0, 0, 1, 1], [], []>} : vector<8x128xf32>, vector<128x128xf32>, vector<8x128xf32> -> vector<8x128xf32>
    %cst_9 = arith.constant 9.99999996E-13 : f32
    %57 = vector.broadcast %cst_9 : f32 to vector<8x128xf32>
    %58 = arith.addf %56, %57 : vector<8x128xf32>
    %59 = math.rsqrt %58 : vector<8x128xf32>
    %60 = arith.mulf %53, %59 : vector<8x128xf32>
    %c0_10 = arith.constant 0 : index
    %c0_11 = arith.constant 0 : index
    %61 = vector.load %arg4[%c0_10, %c0_11] : memref<1x128xf32, #tpu.memory_space<vmem>>, vector<1x128xf32>
    %62 = vector.broadcast %61 : vector<1x128xf32> to vector<8x128xf32>
    %63 = arith.mulf %62, %60 : vector<8x128xf32>
    %c0_12 = arith.constant 0 : index
    %c0_13 = arith.constant 0 : index
    %64 = vector.load %arg5[%c0_12, %c0_13] : memref<1x128xf32, #tpu.memory_space<vmem>>, vector<1x128xf32>
    %65 = vector.broadcast %64 : vector<1x128xf32> to vector<8x128xf32>
    %66 = arith.addf %63, %65 : vector<8x128xf32>
    %c0_14 = arith.constant 0 : index
    %c0_15 = arith.constant 0 : index
    %67 = vector.load %arg6[%c0_14, %c0_15] : memref<8x128xf32, #tpu.memory_space<vmem>>, vector<8x128xf32>
    tpu.vector_store %arg6[%c0_14, %c0_15], %66 {strides = array<i32>} : memref<8x128xf32, #tpu.memory_space<vmem>>, vector<8x128xf32>,
    return
  }
  func.func @transform_0(%arg0: i32) -> (i32, i32) {
    %c0_i32 = arith.constant 0 : i32
    %c0_i32_0 = arith.constant 0 : i32
    return %arg0, %c0_i32 : i32, i32
  }
  func.func @transform_1(%arg0: i32) -> (i32, i32) {
    %c0_i32 = arith.constant 0 : i32
    %c0_i32_0 = arith.constant 0 : i32
    %c0_i32_1 = arith.constant 0 : i32
    return %c0_i32, %c0_i32_0 : i32, i32
  }
  func.func @transform_2(%arg0: i32) -> (i32, i32) {
    %c0_i32 = arith.constant 0 : i32
    %c0_i32_0 = arith.constant 0 : i32
    %c0_i32_1 = arith.constant 0 : i32
    return %c0_i32, %c0_i32_0 : i32, i32
  }
  func.func @transform_3(%arg0: i32) -> (i32, i32) {
    %c0_i32 = arith.constant 0 : i32
    %c0_i32_0 = arith.constant 0 : i32
    %c0_i32_1 = arith.constant 0 : i32
    return %c0_i32, %c0_i32_0 : i32, i32
  }
  func.func @transform_4(%arg0: i32) -> (i32, i32) {
    %c0_i32 = arith.constant 0 : i32
    %c0_i32_0 = arith.constant 0 : i32
    %c0_i32_1 = arith.constant 0 : i32
    return %c0_i32, %c0_i32_0 : i32, i32
  }
  func.func @transform_5(%arg0: i32) -> (i32, i32) {
    %c0_i32 = arith.constant 0 : i32
    %c0_i32_0 = arith.constant 0 : i32
    return %arg0, %c0_i32 : i32, i32
  }
}

</mosaic_0001>

<llo_original>
// kernel: embeddings_forward.1
$region0: #{embeddings_forward.1}
  #allocation0 [shape = 'u32[]', space=smem, size = 0x4, offset = 0x4, fixed_abs, tag = 'smem constant byte address 0x4 - core index']
  #allocation1 [shape = 'u32[144,128]{1,0:T(1,128)}', space=vmem, size = 0x12000, scoped, tag = 'internal scratch']
  %s0 = inlined_call_operand.vmem [shape: s32[8,8], index: 0, kind: input, shape index: {}]
  %s1 = inlined_call_operand.vmem [shape: f32[320,128], index: 1, kind: input, shape index: {}]
  %s2 = inlined_call_operand.vmem [shape: f32[128,128], index: 2, kind: input, shape index: {}]
  %s3 = inlined_call_operand.vmem [shape: f32[1,128], index: 3, kind: input, shape index: {}]
  %s4 = inlined_call_operand.vmem [shape: f32[1,128], index: 4, kind: input, shape index: {}]
  %s5 = inlined_call_operand.vmem [shape: f32[8,128], index: 5, kind: output, shape index: {}]
  %s6 = sld [smem:[#allocation0]]
  $region30: #{embeddings_forward.1} parent=0
    _
  %s8 = ssub.s32 1, %s6
  %s9 = scalar_select 0, %s8, %s6
  // Predicated region
  $region2: #{embeddings_forward.1} parent=0 // pred_check
    _
  $region3: #{embeddings_forward.1} parent=0 // pred_check_branch
    %11 = sbr.rel (0) target = $region5
  $region4: #{embeddings_forward.1} parent=0 // pred_region
    _
  $region5: #{embeddings_forward.1} parent=0 // pred_fallthru
    _
  // Predicated region
  $region6: #{embeddings_forward.1} parent=0 // pred_check
    _
  $region7: #{embeddings_forward.1} parent=0 // pred_check_branch
    %13 = sbr.rel (0) target = $region9
  $region8: #{embeddings_forward.1} parent=0 // pred_region
    _
  $region9: #{embeddings_forward.1} parent=0 // pred_fallthru
    _
  // Predicated region
  $region10: #{embeddings_forward.1} parent=0 // pred_check
    _
  $region11: #{embeddings_forward.1} parent=0 // pred_check_branch
    %15 = sbr.rel (0) target = $region13
  $region12: #{embeddings_forward.1} parent=0 // pred_region
    _
  $region13: #{embeddings_forward.1} parent=0 // pred_fallthru
    _
  // Predicated region
  $region14: #{embeddings_forward.1} parent=0 // pred_check
    _
  $region15: #{embeddings_forward.1} parent=0 // pred_check_branch
    %17 = sbr.rel (0) target = $region17
  $region16: #{embeddings_forward.1} parent=0 // pred_region
    _
  $region17: #{embeddings_forward.1} parent=0 // pred_fallthru
    _
  // Predicated region
  $region18: #{embeddings_forward.1} parent=0 // pred_check
    _
  $region19: #{embeddings_forward.1} parent=0 // pred_check_branch
    %19 = sbr.rel (0) target = $region21
  $region20: #{embeddings_forward.1} parent=0 // pred_region
    _
  $region21: #{embeddings_forward.1} parent=0 // pred_fallthru
    _
  %v20 = vld [vmem:[%s0] sm:$0xff]
  %v21 = vlaneseq
  %v22 = vand.u32 %v21, 127
  %v23 = vadd.s32 %v22, 128
  %v24 = vadd.s32 %v22, 256
  %25 = vset.pattern.permute.xlu0 0
  %26 = vperm.xlu0 %25, %v20
  %v27 = vpop.permute.xlu0 %26
  %vm28 = vcmp.eq.s32.totalorder %v22, %v27
  %vm29 = vcmp.eq.s32.totalorder %v23, %v27
  %vm30 = vcmp.eq.s32.totalorder %v24, %v27
  %v31 = vsel %vm28, 1, 0
  %v32 = vsel %vm29, 1, 0
  %v33 = vsel %vm30, 1, 0
  %v34 = vcvt.s32.f32 %v31
  %v35 = vcvt.s32.f32 %v32
  %v36 = vcvt.s32.f32 %v33
  %37 = vset.pattern.permute.xlu0 1
  %38 = vperm.xlu0 %37, %v20
  %v39 = vpop.permute.xlu0 %38
  %vm40 = vcmp.eq.s32.totalorder %v22, %v39
  %vm41 = vcmp.eq.s32.totalorder %v23, %v39
  %vm42 = vcmp.eq.s32.totalorder %v24, %v39
  %v43 = vsel %vm40, 1, 0
  %v44 = vsel %vm41, 1, 0
  %v45 = vsel %vm42, 1, 0
  %v46 = vcvt.s32.f32 %v43
  %v47 = vcvt.s32.f32 %v44
  %v48 = vcvt.s32.f32 %v45
  %v49 = vadd.f32 %v34, %v46
  %v50 = vadd.f32 %v35, %v47
  %v51 = vadd.f32 %v36, %v48
  %52 = vset.pattern.permute.xlu0 2
  %53 = vperm.xlu0 %52, %v20
  %v54 = vpop.permute.xlu0 %53
  %vm55 = vcmp.eq.s32.totalorder %v22, %v54
  %vm56 = vcmp.eq.s32.totalorder %v23, %v54
  %vm57 = vcmp.eq.s32.totalorder %v24, %v54
  %v58 = vsel %vm55, 1, 0
  %v59 = vsel %vm56, 1, 0
  %v60 = vsel %vm57, 1, 0
  %v61 = vcvt.s32.f32 %v58
  %v62 = vcvt.s32.f32 %v59
  %v63 = vcvt.s32.f32 %v60
  %v64 = vadd.f32 %v49, %v61
  %v65 = vadd.f32 %v50, %v62
  %v66 = vadd.f32 %v51, %v63
  %67 = vset.pattern.permute.xlu0 3
  %68 = vperm.xlu0 %67, %v20
  %v69 = vpop.permute.xlu0 %68
  %vm70 = vcmp.eq.s32.totalorder %v22, %v69
  %vm71 = vcmp.eq.s32.totalorder %v23, %v69
  %vm72 = vcmp.eq.s32.totalorder %v24, %v69
  %v73 = vsel %vm70, 1, 0
  %v74 = vsel %vm71, 1, 0
  %v75 = vsel %vm72, 1, 0
  %v76 = vcvt.s32.f32 %v73
  %v77 = vcvt.s32.f32 %v74
  %v78 = vcvt.s32.f32 %v75
  %v79 = vadd.f32 %v64, %v76
  %v80 = vadd.f32 %v65, %v77
  %v81 = vadd.f32 %v66, %v78
  %82 = vset.pattern.permute.xlu0 4
  %83 = vperm.xlu0 %82, %v20
  %v84 = vpop.permute.xlu0 %83
  %vm85 = vcmp.eq.s32.totalorder %v22, %v84
  %vm86 = vcmp.eq.s32.totalorder %v23, %v84
  %vm87 = vcmp.eq.s32.totalorder %v24, %v84
  %v88 = vsel %vm85, 1, 0
  %v89 = vsel %vm86, 1, 0
  %v90 = vsel %vm87, 1, 0
  %v91 = vcvt.s32.f32 %v88
  %v92 = vcvt.s32.f32 %v89
  %v93 = vcvt.s32.f32 %v90
  %v94 = vadd.f32 %v79, %v91
  %v95 = vadd.f32 %v80, %v92
  %v96 = vadd.f32 %v81, %v93
  %97 = vset.pattern.permute.xlu0 5
  %98 = vperm.xlu0 %97, %v20
  %v99 = vpop.permute.xlu0 %98
  %vm100 = vcmp.eq.s32.totalorder %v22, %v99
  %vm101 = vcmp.eq.s32.totalorder %v23, %v99
  %vm102 = vcmp.eq.s32.totalorder %v24, %v99
  %v103 = vsel %vm100, 1, 0
  %v104 = vsel %vm101, 1, 0
  %v105 = vsel %vm102, 1, 0
  %v106 = vcvt.s32.f32 %v103
  %v107 = vcvt.s32.f32 %v104
  %v108 = vcvt.s32.f32 %v105
  %v109 = vadd.f32 %v94, %v106
  %v110 = vadd.f32 %v95, %v107
  %v111 = vadd.f32 %v96, %v108
  %112 = vset.pattern.permute.xlu0 6
  %113 = vperm.xlu0 %112, %v20
  %v114 = vpop.permute.xlu0 %113
  %vm115 = vcmp.eq.s32.totalorder %v22, %v114
  %vm116 = vcmp.eq.s32.totalorder %v23, %v114
  %vm117 = vcmp.eq.s32.totalorder %v24, %v114
  %v118 = vsel %vm115, 1, 0
  %v119 = vsel %vm116, 1, 0
  %v120 = vsel %vm117, 1, 0
  %v121 = vcvt.s32.f32 %v118
  %v122 = vcvt.s32.f32 %v119
  %v123 = vcvt.s32.f32 %v120
  %v124 = vadd.f32 %v109, %v121
  %v125 = vadd.f32 %v110, %v122
  %v126 = vadd.f32 %v111, %v123
  %127 = vset.pattern.permute.xlu0 7
  %128 = vperm.xlu0 %127, %v20
  %v129 = vpop.permute.xlu0 %128
  %vm130 = vcmp.eq.s32.totalorder %v22, %v129
  %vm131 = vcmp.eq.s32.totalorder %v23, %v129
  %vm132 = vcmp.eq.s32.totalorder %v24, %v129
  %v133 = vsel %vm130, 1, 0
  %v134 = vsel %vm131, 1, 0
  %v135 = vsel %vm132, 1, 0
  %v136 = vcvt.s32.f32 %v133
  %v137 = vcvt.s32.f32 %v134
  %v138 = vcvt.s32.f32 %v135
  %v139 = vadd.f32 %v124, %v136
  %v140 = vadd.f32 %v125, %v137
  %v141 = vadd.f32 %v126, %v138
  %v142 = vld [vmem:[%s1] sm:$0xff]
  %v143 = vld [vmem:[%s1 + $0x8] sm:$0xff]
  %v144 = vld [vmem:[%s1 + $0x10] sm:$0xff]
  %v145 = vld [vmem:[%s1 + $0x18] sm:$0xff]
  %v146 = vld [vmem:[%s1 + $0x20] sm:$0xff]
  %v147 = vld [vmem:[%s1 + $0x28] sm:$0xff]
  %v148 = vld [vmem:[%s1 + $0x30] sm:$0xff]
  %v149 = vld [vmem:[%s1 + $0x38] sm:$0xff]
  %v150 = vld [vmem:[%s1 + $0x40] sm:$0xff]
  %v151 = vld [vmem:[%s1 + $0x48] sm:$0xff]
  %v152 = vld [vmem:[%s1 + $0x50] sm:$0xff]
  %v153 = vld [vmem:[%s1 + $0x58] sm:$0xff]
  %v154 = vld [vmem:[%s1 + $0x60] sm:$0xff]
  %v155 = vld [vmem:[%s1 + $0x68] sm:$0xff]
  %v156 = vld [vmem:[%s1 + $0x70] sm:$0xff]
  %v157 = vld [vmem:[%s1 + $0x78] sm:$0xff]
  %v158 = vld [vmem:[%s1 + $0x80] sm:$0xff]
  %v159 = vld [vmem:[%s1 + $0x88] sm:$0xff]
  %v160 = vld [vmem:[%s1 + $0x90] sm:$0xff]
  %v161 = vld [vmem:[%s1 + $0x98] sm:$0xff]
  %v162 = vld [vmem:[%s1 + $0xa0] sm:$0xff]
  %v163 = vld [vmem:[%s1 + $0xa8] sm:$0xff]
  %v164 = vld [vmem:[%s1 + $0xb0] sm:$0xff]
  %v165 = vld [vmem:[%s1 + $0xb8] sm:$0xff]
  %v166 = vld [vmem:[%s1 + $0xc0] sm:$0xff]
  %v167 = vld [vmem:[%s1 + $0xc8] sm:$0xff]
  %v168 = vld [vmem:[%s1 + $0xd0] sm:$0xff]
  %v169 = vld [vmem:[%s1 + $0xd8] sm:$0xff]
  %v170 = vld [vmem:[%s1 + $0xe0] sm:$0xff]
  %v171 = vld [vmem:[%s1 + $0xe8] sm:$0xff]
  %v172 = vld [vmem:[%s1 + $0xf0] sm:$0xff]
  %v173 = vld [vmem:[%s1 + $0xf8] sm:$0xff]
  %v174 = vld [vmem:[%s1 + $0x100] sm:$0xff]
  %v175 = vld [vmem:[%s1 + $0x108] sm:$0xff]
  %v176 = vld [vmem:[%s1 + $0x110] sm:$0xff]
  %v177 = vld [vmem:[%s1 + $0x118] sm:$0xff]
  %v178 = vld [vmem:[%s1 + $0x120] sm:$0xff]
  %v179 = vld [vmem:[%s1 + $0x128] sm:$0xff]
  %v180 = vld [vmem:[%s1 + $0x130] sm:$0xff]
  %v181 = vld [vmem:[%s1 + $0x138] sm:$0xff]
  %vm182 = vcmask 523264
  %v184 = vsel %vm182, %v141, 0
  %186 = vmatprep.subr.mxu0 0.0
  %187 = vmatpush1.msra.mxu0 %v142
  %188 = vmatprep.subr.mxu0 0.0
  %189 = vmatpush1.msra.mxu0 %v143
  %190 = vmatprep.subr.mxu0 0.0
  %191 = vmatpush1.msra.mxu0 %v144
  %192 = vmatprep.subr.mxu0 0.0
  %193 = vmatpush1.msra.mxu0 %v145
  %194 = vmatprep.subr.mxu0 0.0
  %195 = vmatpush1.msra.mxu0 %v146
  %196 = vmatprep.subr.mxu0 0.0
  %197 = vmatpush1.msra.mxu0 %v147
  %198 = vmatprep.subr.mxu0 0.0
  %199 = vmatpush1.msra.mxu0 %v148
  %200 = vmatprep.subr.mxu0 0.0
  %201 = vmatpush1.msra.mxu0 %v149
  %202 = vmatprep.subr.mxu0 0.0
  %203 = vmatpush1.msra.mxu0 %v150
  %204 = vmatprep.subr.mxu0 0.0
  %205 = vmatpush1.msra.mxu0 %v151
  %206 = vmatprep.subr.mxu0 0.0
  %207 = vmatpush1.msra.mxu0 %v152
  %208 = vmatprep.subr.mxu0 0.0
  %209 = vmatpush1.msra.mxu0 %v153
  %210 = vmatprep.subr.mxu0 0.0
  %211 = vmatpush1.msra.mxu0 %v154
  %212 = vmatprep.subr.mxu0 0.0
  %213 = vmatpush1.msra.mxu0 %v155
  %214 = vmatprep.subr.mxu0 0.0
  %215 = vmatpush1.msra.mxu0 %v156
  %216 = vmatprep.subr.mxu0 0.0
  %217 = vmatpush1.msra.mxu0 %v157
  %218 = vmatprep.subr.mxu0 0.0
  %219 = vmatpush1.msra.mxu0 %v158
  %220 = vmatprep.subr.mxu0 0.0
  %221 = vmatpush1.msra.mxu0 %v159
  %222 = vmatprep.subr.mxu0 0.0
  %223 = vmatpush1.msra.mxu0 %v160
  %224 = vmatprep.subr.mxu0 0.0
  %225 = vmatpush1.msra.mxu0 %v161
  %226 = vmatprep.subr.mxu0 0.0
  %227 = vmatpush1.msra.mxu0 %v162
  %228 = vmatprep.subr.mxu0 0.0
  %229 = vmatpush1.msra.mxu0 %v163
  %230 = vmatprep.subr.mxu0 0.0
  %231 = vmatpush1.msra.mxu0 %v164
  %232 = vmatprep.subr.mxu0 0.0
  %233 = vmatpush1.msra.mxu0 %v165
  %234 = vmatprep.subr.mxu0 0.0
  %235 = vmatpush1.msra.mxu0 %v166
  %236 = vmatprep.subr.mxu0 0.0
  %237 = vmatpush1.msra.mxu0 %v167
  %238 = vmatprep.subr.mxu0 0.0
  %239 = vmatpush1.msra.mxu0 %v168
  %240 = vmatprep.subr.mxu0 0.0
  %241 = vmatpush1.msra.mxu0 %v169
  %242 = vmatprep.subr.mxu0 0.0
  %243 = vmatpush1.msra.mxu0 %v170
  %244 = vmatprep.subr.mxu0 0.0
  %245 = vmatpush1.msra.mxu0 %v171
  %246 = vmatprep.subr.mxu0 0.0
  %247 = vmatpush1.msra.mxu0 %v172
  %248 = vmatprep.subr.mxu0 0.0
  %249 = vmatpush1.msra.mxu0 %v173
  %250 = vmatprep.mubr.f32.mxu0 %v140
  %251 = vmatmul.mubr.f32.gmra.mrb[0].mxu0 %v139
  %v252 = vpop.f32.mrb[0].mxu0
  %v253 = vadd.f32 0.0, %v252
  %v254 = vpop.f32.mrb[0].mxu0
  %255 = vdwg.mxu0
  %256 = vmatprep.subr.mxu0 0.0
  %257 = vmatpush1.msra.mxu0 %v174
  %258 = vmatprep.subr.mxu0 0.0
  %259 = vmatpush1.msra.mxu0 %v175
  %260 = vmatprep.subr.mxu0 0.0
  %261 = vmatpush1.msra.mxu0 %v176
  %262 = vmatprep.subr.mxu0 0.0
  %263 = vmatpush1.msra.mxu0 %v177
  %264 = vmatprep.subr.mxu0 0.0
  %265 = vmatpush1.msra.mxu0 %v178
  %266 = vmatprep.subr.mxu0 0.0
  %267 = vmatpush1.msra.mxu0 %v179
  %268 = vmatprep.subr.mxu0 0.0
  %269 = vmatpush1.msra.mxu0 %v180
  %270 = vmatprep.subr.mxu0 0.0
  %271 = vmatpush1.msra.mxu0 %v181
  %272 = vmatprep.subr.mxu0 0.0
  %273 = vmatpush1.msra.mxu0 0.0
  %274 = vmatprep.subr.mxu0 0.0
  %275 = vmatpush1.msra.mxu0 0.0
  %276 = vmatprep.subr.mxu0 0.0
  %277 = vmatpush1.msra.mxu0 0.0
  %278 = vmatprep.subr.mxu0 0.0
  %279 = vmatpush1.msra.mxu0 0.0
  %280 = vmatprep.subr.mxu0 0.0
  %281 = vmatpush1.msra.mxu0 0.0
  %282 = vmatprep.subr.mxu0 0.0
  %283 = vmatpush1.msra.mxu0 0.0
  %284 = vmatprep.subr.mxu0 0.0
  %285 = vmatpush1.msra.mxu0 0.0
  %286 = vmatprep.subr.mxu0 0.0
  %287 = vmatpush1.msra.mxu0 0.0
  %288 = vmatprep.subr.mxu0 0.0
  %289 = vmatpush1.msra.mxu0 0.0
  %290 = vmatprep.subr.mxu0 0.0
  %291 = vmatpush1.msra.mxu0 0.0
  %292 = vmatprep.subr.mxu0 0.0
  %293 = vmatpush1.msra.mxu0 0.0
  %294 = vmatprep.subr.mxu0 0.0
  %295 = vmatpush1.msra.mxu0 0.0
  %296 = vmatprep.subr.mxu0 0.0
  %297 = vmatpush1.msra.mxu0 0.0
  %298 = vmatprep.subr.mxu0 0.0
  %299 = vmatpush1.msra.mxu0 0.0
  %300 = vmatprep.subr.mxu0 0.0
  %301 = vmatpush1.msra.mxu0 0.0
  %302 = vmatprep.subr.mxu0 0.0
  %303 = vmatpush1.msra.mxu0 0.0
  %304 = vmatprep.subr.mxu0 0.0
  %305 = vmatpush1.msra.mxu0 0.0
  %306 = vmatprep.subr.mxu0 0.0
  %307 = vmatpush1.msra.mxu0 0.0
  %308 = vmatprep.subr.mxu0 0.0
  %309 = vmatpush1.msra.mxu0 0.0
  %310 = vmatprep.subr.mxu0 0.0
  %311 = vmatpush1.msra.mxu0 0.0
  %312 = vmatprep.subr.mxu0 0.0
  %313 = vmatpush1.msra.mxu0 0.0
  %314 = vmatprep.subr.mxu0 0.0
  %315 = vmatpush1.msra.mxu0 0.0
  %316 = vmatprep.subr.mxu0 0.0
  %317 = vmatpush1.msra.mxu0 0.0
  %318 = vmatprep.subr.mxu0 0.0
  %319 = vmatpush1.msra.mxu0 0.0
  %320 = vmatprep.mubr.f32.mxu0 0.0
  %321 = vmatmul.mubr.f32.gmra.mrb[0].mxu0 %v184
  %v322 = vpop.f32.mrb[0].mxu0
  %v323 = vadd.f32 %v253, %v322
  %v324 = vpop.f32.mrb[0].mxu0
  %325 = vdwg.mxu0
  %v326 = vld [vmem:[%s2] sm:$0xff]
  %v327 = vld [vmem:[%s2 + $0x8] sm:$0xff]
  %v328 = vld [vmem:[%s2 + $0x10] sm:$0xff]
  %v329 = vld [vmem:[%s2 + $0x18] sm:$0xff]
  %v330 = vld [vmem:[%s2 + $0x20] sm:$0xff]
  %v331 = vld [vmem:[%s2 + $0x28] sm:$0xff]
  %v332 = vld [vmem:[%s2 + $0x30] sm:$0xff]
  %v333 = vld [vmem:[%s2 + $0x38] sm:$0xff]
  %v334 = vld [vmem:[%s2 + $0x40] sm:$0xff]
  %v335 = vld [vmem:[%s2 + $0x48] sm:$0xff]
  %v336 = vld [vmem:[%s2 + $0x50] sm:$0xff]
  %v337 = vld [vmem:[%s2 + $0x58] sm:$0xff]
  %v338 = vld [vmem:[%s2 + $0x60] sm:$0xff]
  %v339 = vld [vmem:[%s2 + $0x68] sm:$0xff]
  %v340 = vld [vmem:[%s2 + $0x70] sm:$0xff]
  %v341 = vld [vmem:[%s2 + $0x78] sm:$0xff]
  %342 = vmatprep.subr.mxu0 0.0
  %343 = vmatpush1.msra.mxu0 %v326
  %344 = vmatprep.subr.mxu0 0.0
  %345 = vmatpush1.msra.mxu0 %v327
  %346 = vmatprep.subr.mxu0 0.0
  %347 = vmatpush1.msra.mxu0 %v328
  %348 = vmatprep.subr.mxu0 0.0
  %349 = vmatpush1.msra.mxu0 %v329
  %350 = vmatprep.subr.mxu0 0.0
  %351 = vmatpush1.msra.mxu0 %v330
  %352 = vmatprep.subr.mxu0 0.0
  %353 = vmatpush1.msra.mxu0 %v331
  %354 = vmatprep.subr.mxu0 0.0
  %355 = vmatpush1.msra.mxu0 %v332
  %356 = vmatprep.subr.mxu0 0.0
  %357 = vmatpush1.msra.mxu0 %v333
  %358 = vmatprep.subr.mxu0 0.0
  %359 = vmatpush1.msra.mxu0 %v334
  %360 = vmatprep.subr.mxu0 0.0
  %361 = vmatpush1.msra.mxu0 %v335
  %362 = vmatprep.subr.mxu0 0.0
  %363 = vmatpush1.msra.mxu0 %v336
  %364 = vmatprep.subr.mxu0 0.0
  %365 = vmatpush1.msra.mxu0 %v337
  %366 = vmatprep.subr.mxu0 0.0
  %367 = vmatpush1.msra.mxu0 %v338
  %368 = vmatprep.subr.mxu0 0.0
  %369 = vmatpush1.msra.mxu0 %v339
  %370 = vmatprep.subr.mxu0 0.0
  %371 = vmatpush1.msra.mxu0 %v340
  %372 = vmatprep.subr.mxu0 0.0
  %373 = vmatpush1.msra.mxu0 %v341
  %374 = vmatprep.subr.mxu0 0.0
  %375 = vmatpush1.msra.mxu0 0.0
  %376 = vmatprep.subr.mxu0 0.0
  %377 = vmatpush1.msra.mxu0 0.0
  %378 = vmatprep.subr.mxu0 0.0
  %379 = vmatpush1.msra.mxu0 0.0
  %380 = vmatprep.subr.mxu0 0.0
  %381 = vmatpush1.msra.mxu0 0.0
  %382 = vmatprep.subr.mxu0 0.0
  %383 = vmatpush1.msra.mxu0 0.0
  %384 = vmatprep.subr.mxu0 0.0
  %385 = vmatpush1.msra.mxu0 0.0
  %386 = vmatprep.subr.mxu0 0.0
  %387 = vmatpush1.msra.mxu0 0.0
  %388 = vmatprep.subr.mxu0 0.0
  %389 = vmatpush1.msra.mxu0 0.0
  %390 = vmatprep.subr.mxu0 0.0
  %391 = vmatpush1.msra.mxu0 0.0
  %392 = vmatprep.subr.mxu0 0.0
  %393 = vmatpush1.msra.mxu0 0.0
  %394 = vmatprep.subr.mxu0 0.0
  %395 = vmatpush1.msra.mxu0 0.0
  %396 = vmatprep.subr.mxu0 0.0
  %397 = vmatpush1.msra.mxu0 0.0
  %398 = vmatprep.subr.mxu0 0.0
  %399 = vmatpush1.msra.mxu0 0.0
  %400 = vmatprep.subr.mxu0 0.0
  %401 = vmatpush1.msra.mxu0 0.0
  %402 = vmatprep.subr.mxu0 0.0
  %403 = vmatpush1.msra.mxu0 0.0
  %404 = vmatprep.subr.mxu0 0.0
  %405 = vmatpush1.msra.mxu0 0.0
  %406 = vmatprep.mubr.f32.mxu0 0.0
  %407 = vmatmul.mubr.f32.gmra.mrb[0].mxu0 %v323
  %v408 = vpop.f32.mrb[0].mxu0
  %v409 = vadd.f32 0.0, %v408
  %v410 = vpop.f32.mrb[0].mxu0
  %411 = vdwg.mxu0
  %v412 = vsub.f32 %v323, %v409
  %v413 = vmul.f32 %v412, %v412
  %414 = vmatprep.subr.mxu0 0.0
  %415 = vmatpush1.msra.mxu0 %v326
  %416 = vmatprep.subr.mxu0 0.0
  %417 = vmatpush1.msra.mxu0 %v327
  %418 = vmatprep.subr.mxu0 0.0
  %419 = vmatpush1.msra.mxu0 %v328
  %420 = vmatprep.subr.mxu0 0.0
  %421 = vmatpush1.msra.mxu0 %v329
  %422 = vmatprep.subr.mxu0 0.0
  %423 = vmatpush1.msra.mxu0 %v330
  %424 = vmatprep.subr.mxu0 0.0
  %425 = vmatpush1.msra.mxu0 %v331
  %426 = vmatprep.subr.mxu0 0.0
  %427 = vmatpush1.msra.mxu0 %v332
  %428 = vmatprep.subr.mxu0 0.0
  %429 = vmatpush1.msra.mxu0 %v333
  %430 = vmatprep.subr.mxu0 0.0
  %431 = vmatpush1.msra.mxu0 %v334
  %432 = vmatprep.subr.mxu0 0.0
  %433 = vmatpush1.msra.mxu0 %v335
  %434 = vmatprep.subr.mxu0 0.0
  %435 = vmatpush1.msra.mxu0 %v336
  %436 = vmatprep.subr.mxu0 0.0
  %437 = vmatpush1.msra.mxu0 %v337
  %438 = vmatprep.subr.mxu0 0.0
  %439 = vmatpush1.msra.mxu0 %v338
  %440 = vmatprep.subr.mxu0 0.0
  %441 = vmatpush1.msra.mxu0 %v339
  %442 = vmatprep.subr.mxu0 0.0
  %443 = vmatpush1.msra.mxu0 %v340
  %444 = vmatprep.subr.mxu0 0.0
  %445 = vmatpush1.msra.mxu0 %v341
  %446 = vmatprep.subr.mxu0 0.0
  %447 = vmatpush1.msra.mxu0 0.0
  %448 = vmatprep.subr.mxu0 0.0
  %449 = vmatpush1.msra.mxu0 0.0
  %450 = vmatprep.subr.mxu0 0.0
  %451 = vmatpush1.msra.mxu0 0.0
  %452 = vmatprep.subr.mxu0 0.0
  %453 = vmatpush1.msra.mxu0 0.0
  %454 = vmatprep.subr.mxu0 0.0
  %455 = vmatpush1.msra.mxu0 0.0
  %456 = vmatprep.subr.mxu0 0.0
  %457 = vmatpush1.msra.mxu0 0.0
  %458 = vmatprep.subr.mxu0 0.0
  %459 = vmatpush1.msra.mxu0 0.0
  %460 = vmatprep.subr.mxu0 0.0
  %461 = vmatpush1.msra.mxu0 0.0
  %462 = vmatprep.subr.mxu0 0.0
  %463 = vmatpush1.msra.mxu0 0.0
  %464 = vmatprep.subr.mxu0 0.0
  %465 = vmatpush1.msra.mxu0 0.0
  %466 = vmatprep.subr.mxu0 0.0
  %467 = vmatpush1.msra.mxu0 0.0
  %468 = vmatprep.subr.mxu0 0.0
  %469 = vmatpush1.msra.mxu0 0.0
  %470 = vmatprep.subr.mxu0 0.0
  %471 = vmatpush1.msra.mxu0 0.0
  %472 = vmatprep.subr.mxu0 0.0
  %473 = vmatpush1.msra.mxu0 0.0
  %474 = vmatprep.subr.mxu0 0.0
  %475 = vmatpush1.msra.mxu0 0.0
  %476 = vmatprep.subr.mxu0 0.0
  %477 = vmatpush1.msra.mxu0 0.0
  %478 = vmatprep.mubr.f32.mxu0 0.0
  %479 = vmatmul.mubr.f32.gmra.mrb[0].mxu0 %v413
  %v480 = vpop.f32.mrb[0].mxu0
  %v481 = vadd.f32 1e-12, %v480
  %v482 = vpop.f32.mrb[0].mxu0
  %483 = vdwg.mxu0
  %v484 = vrsqrt.pop %v481
  %v485 = vmul.f32 %v412, %v484
  %v486 = vld [vmem:[%s3] sm:$0x1]
  %v488 = vlaneseq
  %v489 = vshrl.u32 %v488, 7
  %v490 = vsub.s32 0, %v489
  %v491 = vrot.slane %v486, %v490
  %v493 = vmul.f32 %v491, %v485
  %v494 = vld [vmem:[%s4] sm:$0x1]
  %v496 = vlaneseq
  %v497 = vshrl.u32 %v496, 7
  %v498 = vsub.s32 0, %v497
  %v499 = vrot.slane %v494, %v498
  %v501 = vadd.f32 %v493, %v499
  %502 = vst [vmem:[%s5] sm:$0xff] %v501
  // Predicated region
  $region22: #{embeddings_forward.1} parent=0 // pred_check
    _
  $region23: #{embeddings_forward.1} parent=0 // pred_check_branch
    %504 = sbr.rel (0) target = $region25
  $region24: #{embeddings_forward.1} parent=0 // pred_region
    _
  $region25: #{embeddings_forward.1} parent=0 // pred_fallthru
    _
  // Predicated region
  $region26: #{embeddings_forward.1} parent=0 // pred_check
    _
  $region27: #{embeddings_forward.1} parent=0 // pred_check_branch
    %506 = sbr.rel (0) target = $region29
  $region28: #{embeddings_forward.1} parent=0 // pred_region
    _
  $region29: #{embeddings_forward.1} parent=0 // pred_fallthru
    _

</llo_original>
